<compile_context>
chip_gen: v6e
topology: v6e:2x2x1
jax: 0.10.0
libtpu: 0.0.40
codegen_flags: <defaults>
</compile_context>

<pallas_src>
import functools

import jax
import jax.numpy as jnp
from jax.experimental import pallas as pl
from jax.experimental.pallas import tpu as pltpu


def _round_up(x, m):
    return ((x + m - 1) // m) * m


def _pool_kernel(tok_ref, table_ref, pooled_ref, *, batch, seq, inv_s):
    """Embedding gather + mean over the sequence axis.  Runs once (grid=(1,)).

    tok_ref    : (B*S,)    int32 SMEM  -- scalar-prefetched token ids
    table_ref  : (Vr, Dp)  f32   VMEM  -- embedding table (row 0 = padding row)
    pooled_ref : (Bp, Dp)  f32   VMEM  -- mean-pooled embeddings; rows >= B are 0
    """
    dp = table_ref.shape[1]
    rows = []
    for b in range(batch):
        # Gather the S rows of this example into one (S, Dp) tile, then reduce
        # with a single XLU sum instead of a serial length-S VALU add chain.
        gathered = jnp.concatenate(
            [table_ref[pl.ds(tok_ref[b * seq + s], 1), :] for s in range(seq)],
            axis=0,
        )                                                       # (S, Dp)
        rows.append(jnp.sum(gathered, axis=0, keepdims=True))   # (1, Dp)
    pooled = jnp.concatenate(rows, axis=0) * inv_s               # (B, Dp)
    pad = pooled_ref.shape[0] - batch
    if pad:
        pooled = jnp.concatenate(
            [pooled, jnp.zeros((pad, dp), pooled.dtype)], axis=0)
    pooled_ref[...] = pooled


def _logits_kernel(pooled_ref, w_t_ref, b_ref, o_ref):
    """One vocab tile of the output linear: (Bp, Dp) @ (Dp, TN) + b.

    pooled_ref : (Bp, Dp)  f32   VMEM  -- same (tiny) block every grid step
    w_t_ref    : (Dp, TN)  bf16  VMEM  -- streamed weight tile, (D, V) layout
    b_ref      : (1, TN)   f32   VMEM
    o_ref      : (Bp, TN)  f32   VMEM
    """
    o_ref[...] = (
        jnp.dot(pooled_ref[...].astype(jnp.bfloat16), w_t_ref[...],
                preferred_element_type=jnp.float32)
        + b_ref[...]
    )


def word2vec_predict(tokens, emb_table, linear_w_t, linear_b, *, tile_n=512):
    """Pallas forward of Word2vecPredict.

    tokens     : (B, S) int32
    emb_table  : (V, D) f32   -- nn.Embedding weight (row 0 zeroed, padding_idx=0)
    linear_w_t : (D, V) f32   -- nn.Linear weight, pre-transposed once at load time
    linear_b   : (V,)   f32
    returns    : (B, V) f32 logits (same math as the torch forward)
    """
    B, S = tokens.shape
    V, D = emb_table.shape

    # Contraction dim padded only to the bf16 sublane-packing multiple (16),
    # not 128: the logits kernel is HBM-bound on W^T, so padded K bytes are
    # pure waste (100 -> 112 instead of 128).
    Dp = _round_up(D, 16)
    Bp = _round_up(B, 8)              # unmasked (8-sublane) output stores
    Vr = _round_up(V, 8)              # sublane-aligned table rows
    # 512-lane vocab tiles ~= 0.2 MiB of bf16 W^T per step (x2 buffers): large
    # DMAs, few grid steps, and for realistic vocabs still >= 2 tiles so the
    # "parallel" vocab axis can split across v7x's two TensorCores.
    tile_n = max(128, min(tile_n, _round_up(V, 128)))
    Vp = _round_up(V, tile_n)

    # Zero padding keeps numerics exact: padded D columns contribute 0 to the
    # dot; padded batch rows / vocab columns are sliced off below.
    # (In production these padded / bf16-cast buffers would be built once at
    # load time, like the W transpose; they are rebuilt per call here only for
    # clarity of the demo.)
    table_p = jnp.zeros((Vr, Dp), jnp.float32).at[:V, :D].set(emb_table)
    w_t_p = (jnp.zeros((Dp, Vp), jnp.bfloat16)
             .at[:D, :V].set(linear_w_t.astype(jnp.bfloat16)))
    b_p = jnp.zeros((1, Vp), jnp.float32).at[0, :V].set(linear_b)

    # Clamp ids: Pallas does not bounds-check VMEM gathers, so an out-of-range
    # token would silently read adjacent VMEM (torch would raise instead).
    tok_flat = jnp.clip(tokens.reshape(-1).astype(jnp.int32), 0, V - 1)

    # ---- Kernel 1: embedding gather + mean, computed exactly once. ----------
    pooled = pl.pallas_call(
        functools.partial(_pool_kernel, batch=B, seq=S, inv_s=1.0 / S),
        out_shape=jax.ShapeDtypeStruct((Bp, Dp), jnp.float32),
        grid_spec=pltpu.PrefetchScalarGridSpec(
            num_scalar_prefetch=1,                      # token ids -> SMEM
            grid=(1,),
            in_specs=[pl.BlockSpec((Vr, Dp), lambda i, toks: (0, 0))],
            out_specs=pl.BlockSpec((Bp, Dp), lambda i, toks: (0, 0)),
        ),
    )(tok_flat, table_p)

    # ---- Kernel 2: vocab-tiled linear, HBM-bound on the streamed bf16 W^T. --
    cost = pl.CostEstimate(
        flops=2 * Bp * Dp * Vp,
        transcendentals=0,
        bytes_accessed=Dp * Vp * 2 + Bp * Dp * 4 + Vp * 4 + Bp * Vp * 4,
    )
    out = pl.pallas_call(
        _logits_kernel,
        out_shape=jax.ShapeDtypeStruct((Bp, Vp), jnp.float32),
        grid_spec=pl.GridSpec(
            grid=(Vp // tile_n,),
            in_specs=[
                pl.BlockSpec((Bp, Dp), lambda j: (0, 0)),        # pooled (const)
                pl.BlockSpec((Dp, tile_n), lambda j: (0, j)),    # W^T tile
                pl.BlockSpec((1, tile_n), lambda j: (0, j)),     # bias tile
            ],
            out_specs=pl.BlockSpec((Bp, tile_n), lambda j: (0, j)),
        ),
        compiler_params=pltpu.CompilerParams(
            # Vocab tiles are independent -> shardable across both v7x cores.
            dimension_semantics=("parallel",),
        ),
        cost_estimate=cost,
    )(pooled, w_t_p, b_p)

    # Drop padded batch rows / vocab columns (cheap here; for very large V the
    # padded (Bp, Vp) output could be consumed directly instead).
    return out[:B, :V]


if __name__ == "__main__":
    key = jax.random.PRNGKey(0)
    k_emb, k_w, k_b, k_tok = jax.random.split(key, 4)

    B, S = 2, 8            # batch, sequence length
    VOCAB = 48             # len(d_word_index)
    D = 100                # embedding dim fixed by the module

    # nn.Embedding(vocab, 100, padding_idx=0): row 0 is zero.
    emb_table = jax.random.normal(k_emb, (VOCAB, D), dtype=jnp.float32)
    emb_table = emb_table.at[0].set(0.0)

    # nn.Linear(100, vocab): weight (vocab, 100), bias (vocab,)
    linear_w = jax.random.normal(k_w, (VOCAB, D), dtype=jnp.float32) * 0.1
    linear_b = jax.random.normal(k_b, (VOCAB,), dtype=jnp.float32) * 0.1

    # Pre-store the linear weight in (D, V) layout once (load time, not per call).
    linear_w_t = jnp.asarray(linear_w.T)

    tokens = jax.random.randint(k_tok, (B, S), 0, VOCAB, dtype=jnp.int32)

    out = word2vec_predict(tokens, emb_table, linear_w_t, linear_b)
    out = jax.block_until_ready(out)

    # Pure-JAX f32 reference of the torch forward.
    vec = jnp.take(emb_table, tokens, axis=0)          # (B, S, D)
    vec = jnp.mean(vec, axis=1)                        # (B, D)
    ref = vec @ linear_w.T + linear_b                  # (B, VOCAB)

    assert out.shape == (B, VOCAB)
    # Tolerance loosened for the bf16 weight stream (f32 accumulate).
    assert jnp.allclose(out, ref, atol=2e-2, rtol=2e-2), "mismatch vs reference"
    print("KERNEL_OK")
</pallas_src>

<mosaic_0001>
module attributes {stable_mosaic.version = 11 : i64} {
  func.func @_pool_kernel(%arg0: i32, %arg1: memref<16xi32, #tpu.memory_space<smem>>, %arg2: memref<48x112xf32, #tpu.memory_space<vmem>>, %arg3: memref<8x112xf32, #tpu.memory_space<vmem>>) attributes {dimension_semantics = [#tpu.dimension_semantics<arbitrary>], iteration_bounds = array<i64: 1>, scalar_prefetch = 1 : i64, scratch_operands = 0 : i64, tpu.core_type = #tpu.core_type<tc>, window_params = [{pipeline_mode = #tpu.pipeline_mode<synchronous>, transform_indices = @transform_0, window_bounds = array<i64: 48, 112>}, {pipeline_mode = #tpu.pipeline_mode<synchronous>, transform_indices = @transform_1, window_bounds = array<i64: 8, 112>}]} {
    %c0 = arith.constant 0 : index
    %0 = memref.load %arg1[%c0] : memref<16xi32, #tpu.memory_space<smem>>
    %1 = arith.index_cast %0 : i32 to index
    %c0_0 = arith.constant 0 : index
    %2 = vector.load %arg2[%1, %c0_0] : memref<48x112xf32, #tpu.memory_space<vmem>>, vector<1x112xf32>
    %c1 = arith.constant 1 : index
    %3 = memref.load %arg1[%c1] : memref<16xi32, #tpu.memory_space<smem>>
    %4 = arith.index_cast %3 : i32 to index
    %c0_1 = arith.constant 0 : index
    %5 = vector.load %arg2[%4, %c0_1] : memref<48x112xf32, #tpu.memory_space<vmem>>, vector<1x112xf32>
    %c2 = arith.constant 2 : index
    %6 = memref.load %arg1[%c2] : memref<16xi32, #tpu.memory_space<smem>>
    %7 = arith.index_cast %6 : i32 to index
    %c0_2 = arith.constant 0 : index
    %8 = vector.load %arg2[%7, %c0_2] : memref<48x112xf32, #tpu.memory_space<vmem>>, vector<1x112xf32>
    %c3 = arith.constant 3 : index
    %9 = memref.load %arg1[%c3] : memref<16xi32, #tpu.memory_space<smem>>
    %10 = arith.index_cast %9 : i32 to index
    %c0_3 = arith.constant 0 : index
    %11 = vector.load %arg2[%10, %c0_3] : memref<48x112xf32, #tpu.memory_space<vmem>>, vector<1x112xf32>
    %c4 = arith.constant 4 : index
    %12 = memref.load %arg1[%c4] : memref<16xi32, #tpu.memory_space<smem>>
    %13 = arith.index_cast %12 : i32 to index
    %c0_4 = arith.constant 0 : index
    %14 = vector.load %arg2[%13, %c0_4] : memref<48x112xf32, #tpu.memory_space<vmem>>, vector<1x112xf32>
    %c5 = arith.constant 5 : index
    %15 = memref.load %arg1[%c5] : memref<16xi32, #tpu.memory_space<smem>>
    %16 = arith.index_cast %15 : i32 to index
    %c0_5 = arith.constant 0 : index
    %17 = vector.load %arg2[%16, %c0_5] : memref<48x112xf32, #tpu.memory_space<vmem>>, vector<1x112xf32>
    %c6 = arith.constant 6 : index
    %18 = memref.load %arg1[%c6] : memref<16xi32, #tpu.memory_space<smem>>
    %19 = arith.index_cast %18 : i32 to index
    %c0_6 = arith.constant 0 : index
    %20 = vector.load %arg2[%19, %c0_6] : memref<48x112xf32, #tpu.memory_space<vmem>>, vector<1x112xf32>
    %c7 = arith.constant 7 : index
    %21 = memref.load %arg1[%c7] : memref<16xi32, #tpu.memory_space<smem>>
    %22 = arith.index_cast %21 : i32 to index
    %c0_7 = arith.constant 0 : index
    %23 = vector.load %arg2[%22, %c0_7] : memref<48x112xf32, #tpu.memory_space<vmem>>, vector<1x112xf32>
    %24 = tpu.concatenate %2, %5, %8, %11, %14, %17, %20, %23 in 0 : vector<1x112xf32>, vector<1x112xf32>, vector<1x112xf32>, vector<1x112xf32>, vector<1x112xf32>, vector<1x112xf32>, vector<1x112xf32>, vector<1x112xf32> -> vector<8x112xf32>
    %cst = arith.constant dense<0.000000e+00> : vector<112xf32>
    %25 = vector.multi_reduction <add>, %24, %cst [0] : vector<8x112xf32> to vector<112xf32>
    %26 = vector.shape_cast %25 : vector<112xf32> to vector<1x112xf32>
    %c8 = arith.constant 8 : index
    %27 = memref.load %arg1[%c8] : memref<16xi32, #tpu.memory_space<smem>>
    %28 = arith.index_cast %27 : i32 to index
    %c0_8 = arith.constant 0 : index
    %29 = vector.load %arg2[%28, %c0_8] : memref<48x112xf32, #tpu.memory_space<vmem>>, vector<1x112xf32>
    %c9 = arith.constant 9 : index
    %30 = memref.load %arg1[%c9] : memref<16xi32, #tpu.memory_space<smem>>
    %31 = arith.index_cast %30 : i32 to index
    %c0_9 = arith.constant 0 : index
    %32 = vector.load %arg2[%31, %c0_9] : memref<48x112xf32, #tpu.memory_space<vmem>>, vector<1x112xf32>
    %c10 = arith.constant 10 : index
    %33 = memref.load %arg1[%c10] : memref<16xi32, #tpu.memory_space<smem>>
    %34 = arith.index_cast %33 : i32 to index
    %c0_10 = arith.constant 0 : index
    %35 = vector.load %arg2[%34, %c0_10] : memref<48x112xf32, #tpu.memory_space<vmem>>, vector<1x112xf32>
    %c11 = arith.constant 11 : index
    %36 = memref.load %arg1[%c11] : memref<16xi32, #tpu.memory_space<smem>>
    %37 = arith.index_cast %36 : i32 to index
    %c0_11 = arith.constant 0 : index
    %38 = vector.load %arg2[%37, %c0_11] : memref<48x112xf32, #tpu.memory_space<vmem>>, vector<1x112xf32>
    %c12 = arith.constant 12 : index
    %39 = memref.load %arg1[%c12] : memref<16xi32, #tpu.memory_space<smem>>
    %40 = arith.index_cast %39 : i32 to index
    %c0_12 = arith.constant 0 : index
    %41 = vector.load %arg2[%40, %c0_12] : memref<48x112xf32, #tpu.memory_space<vmem>>, vector<1x112xf32>
    %c13 = arith.constant 13 : index
    %42 = memref.load %arg1[%c13] : memref<16xi32, #tpu.memory_space<smem>>
    %43 = arith.index_cast %42 : i32 to index
    %c0_13 = arith.constant 0 : index
    %44 = vector.load %arg2[%43, %c0_13] : memref<48x112xf32, #tpu.memory_space<vmem>>, vector<1x112xf32>
    %c14 = arith.constant 14 : index
    %45 = memref.load %arg1[%c14] : memref<16xi32, #tpu.memory_space<smem>>
    %46 = arith.index_cast %45 : i32 to index
    %c0_14 = arith.constant 0 : index
    %47 = vector.load %arg2[%46, %c0_14] : memref<48x112xf32, #tpu.memory_space<vmem>>, vector<1x112xf32>
    %c15 = arith.constant 15 : index
    %48 = memref.load %arg1[%c15] : memref<16xi32, #tpu.memory_space<smem>>
    %49 = arith.index_cast %48 : i32 to index
    %c0_15 = arith.constant 0 : index
    %50 = vector.load %arg2[%49, %c0_15] : memref<48x112xf32, #tpu.memory_space<vmem>>, vector<1x112xf32>
    %51 = tpu.concatenate %29, %32, %35, %38, %41, %44, %47, %50 in 0 : vector<1x112xf32>, vector<1x112xf32>, vector<1x112xf32>, vector<1x112xf32>, vector<1x112xf32>, vector<1x112xf32>, vector<1x112xf32>, vector<1x112xf32> -> vector<8x112xf32>
    %cst_16 = arith.constant dense<0.000000e+00> : vector<112xf32>
    %52 = vector.multi_reduction <add>, %51, %cst_16 [0] : vector<8x112xf32> to vector<112xf32>
    %53 = vector.shape_cast %52 : vector<112xf32> to vector<1x112xf32>
    %54 = tpu.concatenate %26, %53 in 0 : vector<1x112xf32>, vector<1x112xf32> -> vector<2x112xf32>
    %cst_17 = arith.constant 1.250000e-01 : f32
    %55 = vector.broadcast %cst_17 : f32 to vector<2x112xf32>
    %56 = arith.mulf %54, %55 : vector<2x112xf32>
    %cst_18 = arith.constant 0.000000e+00 : f32
    %57 = vector.broadcast %cst_18 : f32 to vector<6x112xf32>
    %58 = tpu.concatenate %56, %57 in 0 : vector<2x112xf32>, vector<6x112xf32> -> vector<8x112xf32>
    %c0_19 = arith.constant 0 : index
    %c0_20 = arith.constant 0 : index
    %59 = vector.load %arg3[%c0_19, %c0_20] : memref<8x112xf32, #tpu.memory_space<vmem>>, vector<8x112xf32>
    tpu.vector_store %arg3[%c0_19, %c0_20], %58 {strides = array<i32>} : memref<8x112xf32, #tpu.memory_space<vmem>>, vector<8x112xf32>,
    return
  }
  func.func @transform_0(%arg0: i32, %arg1: memref<16xi32, #tpu.memory_space<smem>>) -> (i32, i32) {
    %c0_i32 = arith.constant 0 : i32
    %c0_i32_0 = arith.constant 0 : i32
    %c0_i32_1 = arith.constant 0 : i32
    return %c0_i32, %c0_i32_0 : i32, i32
  }
  func.func @transform_1(%arg0: i32, %arg1: memref<16xi32, #tpu.memory_space<smem>>) -> (i32, i32) {
    %c0_i32 = arith.constant 0 : i32
    %c0_i32_0 = arith.constant 0 : i32
    %c0_i32_1 = arith.constant 0 : i32
    return %c0_i32, %c0_i32_0 : i32, i32
  }
}

</mosaic_0001>

<llo_original>
// kernel: tpu_custom_call.1
$region0: #{tpu_custom_call.1}
  #allocation0 [shape = 'u32[]', space=smem, size = 0x4, offset = 0x4, fixed_abs, tag = 'smem constant byte address 0x4 - core index']
  #allocation1 [shape = 'u32[144,128]{1,0:T(1,128)}', space=vmem, size = 0x12000, scoped, tag = 'internal scratch']
  #allocation2 [shape = 's32[1]{0}', space=sflag, size = 0x4, scoped, tag = 'scoped memory for tpu_custom_call.1']
  #allocation3 [shape = 'u8[512]{0}', space=smem, size = 0x200, scoped, tag = 'prefetched SMEM operand 0']
  %s0 = inlined_call_operand.hbm [shape: s32[16], index: 0, kind: input, shape index: {}]
  %s1 = inlined_call_operand.hbm [shape: f32[48,112], index: 1, kind: input, shape index: {}]
  %s2 = inlined_call_operand.hbm [shape: f32[8,112], index: 2, kind: output, shape index: {}]
  %s3 = sld [smem:[#allocation0]]
  $region18: #{tpu_custom_call.1} parent=0
    _
  %s5 = ssub.s32 1, %s3
  %s6 = scalar_select 0, %s5, %s3
  %8 = dma.hbm_to_smem %s0, 16, [#allocation3], [#allocation2]
  %9 = dma.done [#allocation2], 16
  %10 = sfence
  $region1: #{tpu_custom_call.1} parent=0
    #allocation4 [shape = 'u8[24576]{0}', space=vmem, size = 0x6000, scoped, tag = 'input window, operand 1, single buffered']
    #allocation5 [shape = 's32[1]{0}', space=sflag, size = 0x4, scoped, tag = 'scoped memory for tpu_custom_call.1']
    #allocation6 [shape = 's32[1]{0}', space=sflag, size = 0x4, scoped, tag = 'scoped memory for tpu_custom_call.1']
    #allocation7 [shape = 'u8[4096]{0}', space=vmem, size = 0x1000, scoped, tag = 'output window, operand 0, single buffered']
    %11 = vsyncpa [#allocation5], 0
    %12 = vsyncpa [#allocation6], 0
    // Predicated region
    $region2: #{tpu_custom_call.1} parent=1 // pred_check
      _
    $region3: #{tpu_custom_call.1} parent=1 // pred_check_branch
      %14 = sbr.rel (0) target = $region5
    $region4: #{tpu_custom_call.1} parent=1 // pred_region
      %s16 = ssub.s32 768, 768
      %17 = vsyncadd [#allocation5], %s16
      %s18 = sshll.u32 [#allocation4], 4
      %s19 = int_to_ptr.vmem [resolvable:$true] %s18
      %24 = dma.hbm_to_vmem [thread:$0]  %s1, 768, %s19, [#allocation5], 128, 128, 8
    $region5: #{tpu_custom_call.1} parent=1 // pred_fallthru
      _
    // Predicated region
    $region6: #{tpu_custom_call.1} parent=1 // pred_check
      _
    $region7: #{tpu_custom_call.1} parent=1 // pred_check_branch
      %26 = sbr.rel (0) target = $region9
    $region8: #{tpu_custom_call.1} parent=1 // pred_region
      %27 = dma.done [#allocation5], 768
    $region9: #{tpu_custom_call.1} parent=1 // pred_fallthru
      _
    %s28 = sld [smem:[#allocation3]]
    %s29 = scalar_lea.vmem [#allocation4], %s28
    %v30 = vld [vmem:[%s29] sm:$0x1]
    %s31 = sld [smem:[#allocation3 + $0x1]]
    %s32 = scalar_lea.vmem [#allocation4], %s31
    %v33 = vld [vmem:[%s32] sm:$0x1]
    %s34 = sld [smem:[#allocation3 + $0x2]]
    %s35 = scalar_lea.vmem [#allocation4], %s34
    %v36 = vld [vmem:[%s35] sm:$0x1]
    %s37 = sld [smem:[#allocation3 + $0x3]]
    %s38 = scalar_lea.vmem [#allocation4], %s37
    %v39 = vld [vmem:[%s38] sm:$0x1]
    %s40 = sld [smem:[#allocation3 + $0x4]]
    %s41 = scalar_lea.vmem [#allocation4], %s40
    %v42 = vld [vmem:[%s41] sm:$0x1]
    %s43 = sld [smem:[#allocation3 + $0x5]]
    %s44 = scalar_lea.vmem [#allocation4], %s43
    %v45 = vld [vmem:[%s44] sm:$0x1]
    %s46 = sld [smem:[#allocation3 + $0x6]]
    %s47 = scalar_lea.vmem [#allocation4], %s46
    %v48 = vld [vmem:[%s47] sm:$0x1]
    %s49 = sld [smem:[#allocation3 + $0x7]]
    %s50 = scalar_lea.vmem [#allocation4], %s49
    %v51 = vld [vmem:[%s50] sm:$0x1]
    %v53 = vrot.slane %v33, 7
    %v56 = vrot.slane %v36, 6
    %v59 = vrot.slane %v39, 5
    %v62 = vrot.slane %v42, 4
    %v65 = vrot.slane %v45, 3
    %v68 = vrot.slane %v48, 2
    %v71 = vrot.slane %v51, 1
    %vm73 = vcmask 1040384
    %v74 = vsel %vm73, %v30, %v53
    %vm75 = vcmask 1041408
    %v76 = vsel %vm75, %v74, %v56
    %vm77 = vcmask 1042432
    %v78 = vsel %vm77, %v76, %v59
    %vm79 = vcmask 1043456
    %v80 = vsel %vm79, %v78, %v62
    %vm81 = vcmask 1044480
    %v82 = vsel %vm81, %v80, %v65
    %vm83 = vcmask 1045504
    %v84 = vsel %vm83, %v82, %v68
    %vm85 = vcmask 1046528
    %v86 = vsel %vm85, %v84, %v71
    %vm87 = vcmask 916480
    %v88 = vsel %vm87, %v86, 0.0
    %v89 = vrot.slane %v88, 4
    %v90 = vadd.f32 %v88, %v89
    %v91 = vrot.slane %v90, 2
    %v92 = vadd.f32 %v90, %v91
    %v93 = vrot.slane %v92, 1
    %v94 = vadd.f32 %v92, %v93
    %s95 = sld [smem:[#allocation3 + $0x8]]
    %s96 = scalar_lea.vmem [#allocation4], %s95
    %v97 = vld [vmem:[%s96] sm:$0x1]
    %s98 = sld [smem:[#allocation3 + $0x9]]
    %s99 = scalar_lea.vmem [#allocation4], %s98
    %v100 = vld [vmem:[%s99] sm:$0x1]
    %s101 = sld [smem:[#allocation3 + $0xa]]
    %s102 = scalar_lea.vmem [#allocation4], %s101
    %v103 = vld [vmem:[%s102] sm:$0x1]
    %s104 = sld [smem:[#allocation3 + $0xb]]
    %s105 = scalar_lea.vmem [#allocation4], %s104
    %v106 = vld [vmem:[%s105] sm:$0x1]
    %s107 = sld [smem:[#allocation3 + $0xc]]
    %s108 = scalar_lea.vmem [#allocation4], %s107
    %v109 = vld [vmem:[%s108] sm:$0x1]
    %s110 = sld [smem:[#allocation3 + $0xd]]
    %s111 = scalar_lea.vmem [#allocation4], %s110
    %v112 = vld [vmem:[%s111] sm:$0x1]
    %s113 = sld [smem:[#allocation3 + $0xe]]
    %s114 = scalar_lea.vmem [#allocation4], %s113
    %v115 = vld [vmem:[%s114] sm:$0x1]
    %s116 = sld [smem:[#allocation3 + $0xf]]
    %s117 = scalar_lea.vmem [#allocation4], %s116
    %v118 = vld [vmem:[%s117] sm:$0x1]
    %v120 = vrot.slane %v100, 7
    %v123 = vrot.slane %v103, 6
    %v126 = vrot.slane %v106, 5
    %v129 = vrot.slane %v109, 4
    %v132 = vrot.slane %v112, 3
    %v135 = vrot.slane %v115, 2
    %v138 = vrot.slane %v118, 1
    %v140 = vsel %vm73, %v97, %v120
    %v141 = vsel %vm75, %v140, %v123
    %v142 = vsel %vm77, %v141, %v126
    %v143 = vsel %vm79, %v142, %v129
    %v144 = vsel %vm81, %v143, %v132
    %v145 = vsel %vm83, %v144, %v135
    %v146 = vsel %vm85, %v145, %v138
    %v147 = vsel %vm87, %v146, 0.0
    %v148 = vrot.slane %v147, 4
    %v149 = vadd.f32 %v147, %v148
    %v150 = vrot.slane %v149, 2
    %v151 = vadd.f32 %v149, %v150
    %v152 = vrot.slane %v151, 1
    %v153 = vadd.f32 %v151, %v152
    %v154 = vsel %vm73, %v94, %v153
    %v155 = vmul.f32 %v154, 0.125
    %v156 = vsel %vm75, %v155, 0.0
    %157 = vst.msk [vmem:[#allocation7] sm:$0xff] %vm87, %v156
    // Predicated region
    $region10: #{tpu_custom_call.1} parent=1 // pred_check
      _
    $region11: #{tpu_custom_call.1} parent=1 // pred_check_branch
      %159 = sbr.rel (0) target = $region13
    $region12: #{tpu_custom_call.1} parent=1 // pred_region
      %s161 = ssub.s32 128, 128
      %162 = vsyncadd [#allocation6], %s161
      %s164 = sshll.u32 [#allocation7], 4
      %s165 = int_to_ptr.vmem [resolvable:$true] %s164
      %167 = dma.vmem_to_hbm [thread:$0]  %s165, 128, %s2, [#allocation6]
    $region13: #{tpu_custom_call.1} parent=1 // pred_fallthru
      _
    // Predicated region
    $region14: #{tpu_custom_call.1} parent=1 // pred_check
      _
    $region15: #{tpu_custom_call.1} parent=1 // pred_check_branch
      %169 = sbr.rel (0) target = $region17
    $region16: #{tpu_custom_call.1} parent=1 // pred_region
      %170 = dma.done [#allocation6], 128
    $region17: #{tpu_custom_call.1} parent=1 // pred_fallthru
      _
    %171 = vsyncpa [#allocation5], 1
    %172 = vsyncpa [#allocation6], 1

</llo_original>
